<compile_context>
chip_gen: v7x
topology: tpu7x:2x2x1
jax: 0.10.0
libtpu: 0.0.40
codegen_flags: <defaults>
</compile_context>

<pallas_src>
import functools

import jax
import jax.numpy as jnp
from jax.experimental import pallas as pl
from jax.experimental.pallas import tpu as pltpu

_LANE = 128
_SINGLE_BLOCK_BYTES = 1 << 20      # <= 1 MiB total: one full-extent block, no grid
_TARGET_BLOCK_BYTES = 4 << 20      # ~4 MiB per buffer on the tiled path
_MIN_BLOCK_BYTES = 512 << 10       # never shrink tiled blocks below ~512 KiB


def _general_relu_kernel(x_ref, o_ref, *, leak, sub, maxv):
    """Elementwise GeneralReLU on one VMEM tile. Hyperparameters are static floats."""
    x = x_ref[...]
    # `if leak:` truthiness intentionally matches PyTorch: leak=None OR leak==0.0
    # both take the plain-ReLU path (numerically identical anyway).
    if leak:
        y = jnp.where(x >= 0, x, x * jnp.asarray(leak, x.dtype))
    else:
        y = jnp.maximum(x, jnp.zeros((), x.dtype))
    if sub is not None:
        y = y - jnp.asarray(sub, y.dtype)
    if maxv is not None:
        y = jnp.minimum(y, jnp.asarray(maxv, y.dtype))
    o_ref[...] = y


def _sublane_multiple(dtype):
    # f32 -> 8 sublanes per native tile, bf16 -> 16, int8/fp8 -> 32 (sublane packing).
    return max(8, 32 // jnp.dtype(dtype).itemsize)


def _as_static_scalar(v, name):
    """Accept None, Python numbers, or 0-d arrays; reject anything non-scalar."""
    if v is None:
        return None
    if isinstance(v, (int, float)):
        return float(v)
    try:
        return float(v)  # numpy / jnp 0-d scalars (mirrors torch.tensor(maxv) scalar case)
    except (TypeError, ValueError) as e:
        raise TypeError(f"{name} must be None or a scalar for the Pallas kernel") from e


def _pick_lane_width(total):
    """Widest lane-dense last dim for a (R, C) view of `total` elements.

    Returns C (an exact divisor of total), or None for pathological large sizes
    with no usable divisor (caller falls back to a pad+slice pass).
    """
    # Preferred: power-of-two multiples of 128 -> fully lane-dense, unmasked stores.
    for cand in (32768, 16384, 8192, 4096, 2048, 1024, 512, 256, 128):
        if total % cand == 0:
            return cand
    # Ragged total (not a multiple of 128).
    if total <= 131072:
        return total  # one full-extent (1, total) block; still a single HBM pass.
    # Widest exact divisor <= 65536; as the FULL last dim of the view it is a
    # legal block extent even when not a multiple of 128.
    for cand in range(65536, 127, -1):
        if total % cand == 0:
            return cand
    return None


def _run_single_block(x2d, kernel):
    """Whole (small) array as one full-extent VMEM block: no grid, no pipeline."""
    return pl.pallas_call(
        kernel,
        out_shape=jax.ShapeDtypeStruct(x2d.shape, x2d.dtype),
        in_specs=[pl.BlockSpec(memory_space=pltpu.MemorySpace.VMEM)],
        out_specs=pl.BlockSpec(memory_space=pltpu.MemorySpace.VMEM),
    )(x2d)


def _run_tiled(x2d, kernel, block_rows):
    """Row-tiled, pipelined path for large inputs (~4 MiB blocks)."""
    R, C = x2d.shape
    itemsize = jnp.dtype(x2d.dtype).itemsize
    grid = (pl.cdiv(R, block_rows),)  # partial final block is masked by Pallas
    block_bytes = block_rows * C * itemsize
    # Need 2 buffers x (in + out) = 4x block_bytes; request 2x headroom, floor
    # 16 MiB, cap 48 MiB so it stays comfortably under v7x's 64 MiB physical VMEM
    # (v5e/v6e have 128 MiB physical, so 48 MiB is always legal).
    vmem_limit = int(min(48 << 20, max(8 * block_bytes, 16 << 20)))
    return pl.pallas_call(
        kernel,
        out_shape=jax.ShapeDtypeStruct((R, C), x2d.dtype),
        grid_spec=pltpu.PrefetchScalarGridSpec(
            num_scalar_prefetch=0,
            grid=grid,
            in_specs=[pl.BlockSpec((block_rows, C), lambda i: (i, 0))],
            out_specs=pl.BlockSpec((block_rows, C), lambda i: (i, 0)),
        ),
        compiler_params=pltpu.CompilerParams(
            dimension_semantics=("parallel",),  # independent steps; lets v7x's 2 TCs share
            vmem_limit_bytes=vmem_limit,
        ),
    )(x2d)


def _dispatch(x2d, kernel):
    """Choose single-block vs. tiled for a lane-dense (R, C) view."""
    R, C = x2d.shape
    itemsize = jnp.dtype(x2d.dtype).itemsize
    total_bytes = R * C * itemsize

    if total_bytes <= _SINGLE_BLOCK_BYTES:
        return _run_single_block(x2d, kernel)

    sub_mult = _sublane_multiple(x2d.dtype)
    row_bytes = C * itemsize
    # Target ~4 MiB blocks, but keep >= ~3 pipeline steps for mid-size tensors
    # and never drop below ~512 KiB per block.
    desired = min(_TARGET_BLOCK_BYTES, max(_MIN_BLOCK_BYTES, total_bytes // 3))
    target_rows = max(sub_mult, ((desired // row_bytes) // sub_mult) * sub_mult)
    block_rows = R if target_rows >= R else target_rows  # full-extent rows, or a sub_mult multiple
    return _run_tiled(x2d, kernel, block_rows)


def general_relu_pallas(x, leak=None, sub=None, maxv=None):
    """Elementwise GeneralReLU on an arbitrary-shape tensor via Pallas TPU kernels."""
    orig_shape = x.shape
    total = x.size
    if total == 0:
        return x

    leak = _as_static_scalar(leak, "leak")
    sub = _as_static_scalar(sub, "sub")
    maxv = _as_static_scalar(maxv, "maxv")
    kernel = functools.partial(_general_relu_kernel, leak=leak, sub=sub, maxv=maxv)

    x_flat = x.reshape(-1)
    C = _pick_lane_width(total)

    if C is None:
        # Pathological: huge element count with no usable divisor (e.g. a large prime).
        # TODO(synk): handle via an in-kernel masked last-block DMA instead of this
        # pad + slice, which costs ~2 extra HBM passes (rare path, correctness first).
        pad = (-total) % _LANE
        xp = jnp.pad(x_flat, (0, pad))
        out2d = _dispatch(xp.reshape(-1, _LANE), kernel)
        return out2d.reshape(-1)[:total].reshape(orig_shape)

    x2d = x_flat.reshape(total // C, C)
    out2d = _dispatch(x2d, kernel)
    return out2d.reshape(orig_shape)


def general_relu_ref(x, leak=None, sub=None, maxv=None):
    """Pure-JAX reference mirroring the PyTorch general_relu."""
    if leak:
        y = jnp.where(x >= 0, x, x * leak)
    else:
        y = jnp.maximum(x, 0)
    if sub is not None:
        y = y - sub
    if maxv is not None:
        y = jnp.minimum(y, maxv)
    return y


if __name__ == "__main__":
    # Deterministic hyperparameters for the synthetic module instance.
    LEAK = 0.1
    SUB = 0.4
    MAXV = 6.0

    k0, k1, k2 = jax.random.split(jax.random.PRNGKey(0), 3)

    # 1) Spec shape NCHW (2, 4, 16, 16): total=2048 -> one full-extent (1, 2048) block.
    x = jax.random.normal(k0, (2, 4, 16, 16), dtype=jnp.float32) * 3.0
    out = jax.block_until_ready(general_relu_pallas(x, leak=LEAK, sub=SUB, maxv=MAXV))
    ref = general_relu_ref(x, leak=LEAK, sub=SUB, maxv=MAXV)
    assert out.shape == x.shape and out.dtype == x.dtype
    assert jnp.allclose(out, ref, atol=1e-6, rtol=1e-6), "mismatch vs reference (small)"

    # 2) Default config (leak/sub/maxv all None -> plain ReLU path).
    out2 = jax.block_until_ready(general_relu_pallas(x))
    assert jnp.allclose(out2, general_relu_ref(x), atol=1e-6, rtol=1e-6), "mismatch (default cfg)"

    # 3) Tiled, pipelined path with a PARTIAL final block:
    #    (5,16,64,64) -> 327680 elems -> (10, 32768) view, block_rows=8, grid=(2,).
    xb = jax.random.normal(k1, (5, 16, 64, 64), dtype=jnp.float32) * 3.0
    outb = jax.block_until_ready(general_relu_pallas(xb, leak=LEAK, sub=SUB, maxv=MAXV))
    refb = general_relu_ref(xb, leak=LEAK, sub=SUB, maxv=MAXV)
    assert jnp.allclose(outb, refb, atol=1e-6, rtol=1e-6), "mismatch vs reference (tiled/partial)"

    # 4) Ragged element count (3*5*7 = 105, not a multiple of 128):
    #    single (1, 105) full-extent block, no padding / no concatenate.
    xc = jax.random.normal(k2, (3, 5, 7), dtype=jnp.float32) * 3.0
    outc = jax.block_until_ready(general_relu_pallas(xc, leak=LEAK, sub=SUB, maxv=MAXV))
    refc = general_relu_ref(xc, leak=LEAK, sub=SUB, maxv=MAXV)
    assert jnp.allclose(outc, refc, atol=1e-6, rtol=1e-6), "mismatch vs reference (ragged)"

    print("KERNEL_OK")
</pallas_src>

<mosaic_0001>
module attributes {stable_mosaic.version = 11 : i64} {
  func.func @_general_relu_kernel(%arg0: memref<1x2048xf32, #tpu.memory_space<vmem>>, %arg1: memref<1x2048xf32, #tpu.memory_space<vmem>>) attributes {dimension_semantics = [], scalar_prefetch = 0 : i64, scratch_operands = 0 : i64, tpu.core_type = #tpu.core_type<tc>} {
    %c0 = arith.constant 0 : index
    %c0_0 = arith.constant 0 : index
    %0 = vector.load %arg0[%c0, %c0_0] : memref<1x2048xf32, #tpu.memory_space<vmem>>, vector<1x2048xf32>
    %cst = arith.constant 0.000000e+00 : f32
    %1 = vector.broadcast %cst : f32 to vector<1x2048xf32>
    %2 = arith.cmpf oge, %0, %1 : vector<1x2048xf32>
    %cst_1 = arith.constant 1.000000e-01 : f32
    %3 = vector.broadcast %cst_1 : f32 to vector<1x2048xf32>
    %4 = arith.mulf %0, %3 : vector<1x2048xf32>
    %5 = arith.select %2, %0, %4 : vector<1x2048xi1>, vector<1x2048xf32>
    %cst_2 = arith.constant 4.000000e-01 : f32
    %6 = vector.broadcast %cst_2 : f32 to vector<1x2048xf32>
    %7 = arith.subf %5, %6 : vector<1x2048xf32>
    %cst_3 = arith.constant 6.000000e+00 : f32
    %8 = vector.broadcast %cst_3 : f32 to vector<1x2048xf32>
    %9 = arith.minimumf %7, %8 : vector<1x2048xf32>
    %c0_4 = arith.constant 0 : index
    %c0_5 = arith.constant 0 : index
    %10 = vector.load %arg1[%c0_4, %c0_5] : memref<1x2048xf32, #tpu.memory_space<vmem>>, vector<1x2048xf32>
    tpu.vector_store %arg1[%c0_4, %c0_5], %9 {strides = array<i32>} : memref<1x2048xf32, #tpu.memory_space<vmem>>, vector<1x2048xf32>,
    return
  }
}

</mosaic_0001>

<llo_original>
// kernel: tpu_custom_call.1
$region0: #{tpu_custom_call.1}
  #allocation0 [shape = 'u32[]', space=smem, size = 0x4, offset = 0x4, fixed_abs, tag = 'smem constant byte address 0x4 - core index']
  #allocation1 [shape = 'u32[144,128]{1,0:T(1,128)}', space=vmem, size = 0x12000, scoped, tag = 'internal scratch']
  %s0 = inlined_call_operand.hbm [shape: f32[1,2048], index: 0, kind: input, shape index: {}]
  %s1 = inlined_call_operand.hbm [shape: f32[1,2048], index: 1, kind: output, shape index: {}]
  %s2 = sld [smem:[#allocation0]]
  $region18: #{tpu_custom_call.1} parent=0
    _
  %s4 = ssub.s32 1, %s2
  %s5 = scalar_select 0, %s4, %s2
  $region1: #{tpu_custom_call.1} parent=0
    #allocation2 [shape = 'u8[8192]{0}', space=vmem, size = 0x2000, scoped, tag = 'input window, operand 0, single buffered']
    #allocation3 [shape = 's32[1]{0}', space=sflag, size = 0x4, scoped, tag = 'scoped memory for tpu_custom_call.1']
    #allocation4 [shape = 's32[1]{0}', space=sflag, size = 0x4, scoped, tag = 'scoped memory for tpu_custom_call.1']
    #allocation5 [shape = 'u8[8192]{0}', space=vmem, size = 0x2000, scoped, tag = 'output window, operand 0, single buffered']
    %6 = vsyncpa [#allocation3], 0
    %7 = vsyncpa [#allocation4], 0
    // Predicated region
    $region2: #{tpu_custom_call.1} parent=1 // pred_check
      _
    $region3: #{tpu_custom_call.1} parent=1 // pred_check_branch
      %9 = sbr.rel (0) target = $region5
    $region4: #{tpu_custom_call.1} parent=1 // pred_region
      %s11 = ssub.s32 256, 256
      %12 = vsyncadd [#allocation3], %s11
      %s14 = sshll.u32 [#allocation2], 4
      %s15 = int_to_ptr.vmem [resolvable:$true] %s14
      %17 = dma.hbm_to_vmem [thread:$0]  %s0, 256, %s15, [#allocation3]
    $region5: #{tpu_custom_call.1} parent=1 // pred_fallthru
      _
    // Predicated region
    $region6: #{tpu_custom_call.1} parent=1 // pred_check
      _
    $region7: #{tpu_custom_call.1} parent=1 // pred_check_branch
      %19 = sbr.rel (0) target = $region9
    $region8: #{tpu_custom_call.1} parent=1 // pred_region
      %20 = dma.done [#allocation3], 256
    $region9: #{tpu_custom_call.1} parent=1 // pred_fallthru
      _
    %v21 = vld [vmem:[#allocation2] sm:$0xff]
    %v22 = vld [vmem:[#allocation2 + $0x8] sm:$0xff]
    %vm23 = vcmp.ge.f32.partialorder %v21, 0.0
    %vm24 = vcmp.ge.f32.partialorder %v22, 0.0
    %v25 = vmul.f32 %v21, 0.1
    %v26 = vmul.f32 %v22, 0.1
    %v27 = vsel %vm23, %v21, %v25
    %v28 = vsel %vm24, %v22, %v26
    %v29 = vsub.f32 %v27, 0.4
    %v30 = vsub.f32 %v28, 0.4
    %v31 = vmin.f32 %v29, 6.0
    %v32 = vmin.f32 %v30, 6.0
    %33 = vst [vmem:[#allocation5] sm:$0xff] %v31
    %34 = vst [vmem:[#allocation5 + $0x8] sm:$0xff] %v32
    // Predicated region
    $region10: #{tpu_custom_call.1} parent=1 // pred_check
      _
    $region11: #{tpu_custom_call.1} parent=1 // pred_check_branch
      %36 = sbr.rel (0) target = $region13
    $region12: #{tpu_custom_call.1} parent=1 // pred_region
      %s38 = ssub.s32 256, 256
      %39 = vsyncadd [#allocation4], %s38
      %s41 = sshll.u32 [#allocation5], 4
      %s42 = int_to_ptr.vmem [resolvable:$true] %s41
      %44 = dma.vmem_to_hbm [thread:$0]  %s42, 256, %s1, [#allocation4]
    $region13: #{tpu_custom_call.1} parent=1 // pred_fallthru
      _
    // Predicated region
    $region14: #{tpu_custom_call.1} parent=1 // pred_check
      _
    $region15: #{tpu_custom_call.1} parent=1 // pred_check_branch
      %46 = sbr.rel (0) target = $region17
    $region16: #{tpu_custom_call.1} parent=1 // pred_region
      %47 = dma.done [#allocation4], 256
    $region17: #{tpu_custom_call.1} parent=1 // pred_fallthru
      _
    %48 = vsyncpa [#allocation3], 1
    %49 = vsyncpa [#allocation4], 1

</llo_original>
